<compile_context>
chip_gen: v6e
topology: v6e:2x2x1
jax: 0.10.0
libtpu: 0.0.40
codegen_flags: <defaults>
</compile_context>

<pallas_src>
import functools

import jax
import jax.numpy as jnp
from jax.experimental import pallas as pl
from jax.experimental.pallas import tpu as pltpu

# ---- Circuit constants (defaults of Whitebox_ODE_4th_order.__init__) --------
C1 = 500e-6
C2 = 100e-6
R1 = 50e-3
R2 = 10e-6
L1 = 1e-6
L2 = 100e-9
SLOPE_C2 = 0.1
SLOPE_L1 = 3.0

# Exact reciprocals of the (default-config) constants, folded at trace time.
INV_C1 = 1.0 / C1
INV_C2 = 1.0 / C2
INV_L1 = 1.0 / L1
INV_L2 = 1.0 / L2

_MIN_PALLAS_N = 1024  # below this, plain XLA beats pallas_call overhead


def _cdiv(a, b):
    return -(-a // b)


def _round_up(v, m):
    return ((v + m - 1) // m) * m


def _detect_default_tile_r():
    """Generation-aware default tile (rows of 128 lanes) for the 1-D grid.

    v6e / v7x: 2048 rows -> ~21 MiB double-buffered (fits 32 MiB default
    scoped VMEM; well under v7x's 64 MiB physical).  v5e / unknown: 1024 rows
    (~10.5 MiB) fits the 16 MiB default scoped VMEM with no flag changes.
    """
    try:
        kind = jax.devices()[0].device_kind.lower()
    except Exception:
        return 1024
    if any(tag in kind for tag in ("v6", "v7", "tpu6", "tpu7", "7x")):
        return 2048
    return 1024


_DEFAULT_TILE_R = _detect_default_tile_r()


# ------------------------------ kernel body ----------------------------------
def _ode_kernel(x_ref, z_ref, o_ref):
    """Elementwise ODE RHS on planar tiles.

    x_ref: [2, TILE_R, 128], z_ref: [4, TILE_R, 128], o_ref: [4, TILE_R, 128].
    """
    v_in = x_ref[0]
    i_out = x_ref[1]
    v_out = z_ref[0]
    i_in = z_ref[1]
    v_int = z_ref[2]
    i_int = z_ref[3]

    # Nonlinear capacitor C2(v_OUT): C2*exp(-s*v) for v>=0, C2*exp(s*v) for
    # v<0 == C2*exp(-s*|v|)  =>  1/C2_eff = (1/C2)*exp(s*|v|).
    # Exact constant in the linear branch, single exp, no reciprocal.
    abs_v = jnp.abs(v_out)
    inv_c2 = jnp.where(
        abs_v < 0.1,
        jnp.float32(INV_C2),
        INV_C2 * jnp.exp(SLOPE_C2 * abs_v),
    )

    # Nonlinear inductor L1(i_IN): L1*tanh(s*i)/(s*i)
    #   => 1/L1_eff = (s*i)*(1/L1)*(1/tanh(s*i)).
    # Exact constant in the linear branch; one EUP approx reciprocal on tanh
    # only (tanh >= tanh(0.3) ~ 0.29 in the selected branch).  The unselected
    # branch is guarded so it never produces inf/NaN.
    small_i = jnp.abs(i_in) < 0.1
    s_i = SLOPE_L1 * i_in
    tanh_safe = jnp.where(small_i, jnp.float32(1.0), jnp.tanh(s_i))
    inv_l1 = jnp.where(
        small_i,
        jnp.float32(INV_L1),
        (INV_L1 * s_i) * pl.reciprocal(tanh_safe, approx=True),
    )

    # Output channel order matches torch.stack([d_v_OUT, d_i_IN, d_v_INT, d_i_INT]).
    o_ref[0] = (i_int - i_out) * inv_c2                # d_v_OUT/dt
    o_ref[1] = (v_in - R1 * i_in - v_int) * inv_l1     # d_i_IN/dt
    o_ref[2] = (i_in - i_int) * INV_C1                 # d_v_INT/dt
    o_ref[3] = (v_int - R2 * i_int - v_out) * INV_L2   # d_i_INT/dt


# ------------------------------ planar API ------------------------------------
def whitebox_ode_rhs_planar(x_planar, z_planar, *, tile_r=None):
    """Planar entry point (preferred; use end-to-end inside ODE integrators).

    x_planar: (2, R, 128) f32, z_planar: (4, R, 128) f32 -> (4, R, 128) f32.
    R must be a multiple of 8.  Best performance when R is a multiple of the
    chosen tile (the compat wrapper guarantees this by padding); any padded
    rows simply carry derivatives of the zero-padding (harmless garbage).
    """
    cx, R, lanes_x = x_planar.shape
    cz, Rz, lanes_z = z_planar.shape
    assert lanes_x == 128 and lanes_z == 128, "planar layout requires last dim == 128"
    assert cx == 2 and cz == 4 and Rz == R
    assert R % 8 == 0, "planar layout requires R % 8 == 0"

    pref = int(tile_r) if tile_r is not None else _DEFAULT_TILE_R
    pref = max(8, _round_up(pref, 8))

    # Number of grid steps: amortize the ~0.35us/step overhead with big tiles,
    # but keep >= 2 steps (when R allows) so the "parallel" axis can actually
    # shard across both TensorCores on v7x.
    steps = max(1, _cdiv(R, pref))
    if steps == 1 and R >= 16:
        steps = 2
    tile = min(R, _round_up(_cdiv(R, steps), 8))
    grid = (_cdiv(R, tile),)

    # Double-buffered VMEM footprint: (2 + 4 + 4) planes * tile * 128 * 4B * 2.
    vmem_need = 2 * (2 + 4 + 4) * tile * 128 * 4
    vmem_limit = None
    if vmem_need > (12 << 20):
        # Cap at 48 MiB so the same code stays safe on v7x (64 MiB physical).
        vmem_limit = min(48 << 20, vmem_need + (10 << 20))

    n_elems = R * 128
    cost = pl.CostEstimate(
        flops=int(20 * n_elems),
        transcendentals=int(2 * n_elems),
        bytes_accessed=int(40 * n_elems),
    )

    return pl.pallas_call(
        _ode_kernel,
        out_shape=jax.ShapeDtypeStruct((4, R, 128), jnp.float32),
        grid=grid,
        in_specs=[
            pl.BlockSpec((2, tile, 128), lambda i: (0, i, 0)),
            pl.BlockSpec((4, tile, 128), lambda i: (0, i, 0)),
        ],
        out_specs=pl.BlockSpec((4, tile, 128), lambda i: (0, i, 0)),
        compiler_params=pltpu.CompilerParams(
            dimension_semantics=("parallel",),
            vmem_limit_bytes=vmem_limit,
        ),
        cost_estimate=cost,
    )(x_planar, z_planar)


# --------------------- layout helpers (solve-boundary only) -------------------
def interleaved_to_planar(a):
    """(n, C) interleaved -> (C, R, 128) planar; pads n up so R % 8 == 0.

    Do this ONCE at the boundary of an ODE solve, not per RHS call.
    """
    n, c = a.shape
    n_pad = _round_up(n, 1024)
    a = jnp.asarray(a, jnp.float32).T
    if n_pad != n:
        a = jnp.pad(a, ((0, 0), (0, n_pad - n)))
    return a.reshape(c, n_pad // 128, 128)


def planar_to_interleaved(p, n):
    """(C, R, 128) planar -> (n, C) interleaved (drops padding rows)."""
    c, r, _ = p.shape
    return p.reshape(c, r * 128)[:, :n].T


# ------------------------------ reference -------------------------------------
def _reference_forward(t, z, x):
    """Pure-JAX reference mirroring the PyTorch forward (default config)."""
    del t
    v_in, i_out = x[..., 0], x[..., 1]
    v_out, i_in, v_int, i_int = z[..., 0], z[..., 1], z[..., 2], z[..., 3]
    c2_eff = jnp.where(
        jnp.abs(v_out) < 0.1,
        C2,
        jnp.where(v_out >= 0.0,
                  C2 * jnp.exp(-SLOPE_C2 * v_out),
                  C2 * jnp.exp(SLOPE_C2 * v_out)),
    )
    tanh_term = jnp.tanh(SLOPE_L1 * i_in)
    l1_eff = jnp.where(jnp.abs(i_in) < 0.1, L1,
                       L1 * tanh_term / (SLOPE_L1 * i_in))
    d_v_int = (i_in - i_int) / C1
    d_i_in = v_in / l1_eff - R1 * i_in / l1_eff - v_int / l1_eff
    d_v_out = i_int / c2_eff - i_out / c2_eff
    d_i_int = v_int / L2 - R2 * i_int / L2 - v_out / L2
    return jnp.stack([d_v_out, d_i_in, d_v_int, d_i_int], axis=-1)


# ------------------------- interleaved compat wrapper --------------------------
def _pick_tiling(n, pref_tile):
    """Choose (tile, R_pad) with R_pad % tile == 0, tile % 8 == 0, R_pad*128 >= n."""
    r0 = _round_up(_cdiv(n, 128), 8)
    if r0 <= pref_tile:
        if r0 >= 16:                       # >= 2 full blocks for megacore
            tile = _round_up(_cdiv(r0, 2), 8)
            return tile, 2 * tile
        return r0, r0
    steps = _cdiv(r0, pref_tile)
    tile = _round_up(_cdiv(r0, steps), 8)
    return tile, steps * tile


@functools.partial(jax.jit, static_argnames=("tile_r",))
def whitebox_ode_4th_order_forward(t, z, x, *, tile_r=None):
    """Drop-in equivalent of Whitebox_ODE_4th_order.forward(t, z, x).

    z: (..., 4), x: (..., 2) -> (..., 4) float32.  `t` is unused when x is
    given (as in the PyTorch module).

    NOTE: this compat path pays interleaved<->planar HBM transposes on every
    call (~3x the kernel's own traffic).  ODE integrators should instead keep
    the state planar and call `whitebox_ode_rhs_planar` directly (see the RK4
    demo in __main__), converting layouts only once per solve.
    """
    del t
    z = jnp.asarray(z, jnp.float32)
    x = jnp.asarray(x, jnp.float32)
    batch_shape = z.shape[:-1]
    n = 1
    for d in batch_shape:
        n *= d

    # Tiny inputs: pallas_call/step overhead dominates -> plain XLA.
    if n < _MIN_PALLAS_N:
        return _reference_forward(None, z, x)

    pref = int(tile_r) if tile_r is not None else _DEFAULT_TILE_R
    pref = max(8, _round_up(pref, 8))
    tile, r_pad = _pick_tiling(n, pref)
    n_pad = r_pad * 128

    # Layout glue (slow path): interleaved (..., C) -> planar (C, R, 128),
    # padded so R is a multiple of the tile -> every block full, unmasked stores.
    z2 = z.reshape(n, 4).T          # (4, n)
    x2 = x.reshape(n, 2).T          # (2, n)
    if n_pad != n:
        z2 = jnp.pad(z2, ((0, 0), (0, n_pad - n)))
        x2 = jnp.pad(x2, ((0, 0), (0, n_pad - n)))
    zp = z2.reshape(4, r_pad, 128)
    xp = x2.reshape(2, r_pad, 128)

    out_p = whitebox_ode_rhs_planar(xp, zp, tile_r=tile)   # (4, R, 128)
    out = out_p.reshape(4, n_pad)[:, :n].T
    return out.reshape(*batch_shape, 4)


# ----------------------------------- main --------------------------------------
if __name__ == "__main__":
    key = jax.random.PRNGKey(0)
    kz, kx = jax.random.split(key)
    t = jnp.float32(0.0)

    # Tolerances: the kernel factors 1/L_eff out of the bracket (algebraically
    # identical to the torch per-term division); on the 1/L2=1e7-scaled channel
    # f32 cancellation rounding differs by up to ~O(10) absolute, and one EUP
    # approx reciprocal (on tanh only) contributes a small relative error.
    RTOL, ATOL = 2e-2, 32.0

    # ---- compat (interleaved) path, small tile -> multi-step grid ------------
    batch = (16, 256)                                   # n = 4096 state elements
    z = jax.random.normal(kz, (*batch, 4), dtype=jnp.float32)
    x = jax.random.normal(kx, (*batch, 2), dtype=jnp.float32)
    ref = _reference_forward(t, z, x)

    out = jax.block_until_ready(whitebox_ode_4th_order_forward(t, z, x, tile_r=8))
    assert out.shape == (*batch, 4), out.shape
    assert jnp.allclose(out, ref, rtol=RTOL, atol=ATOL), float(
        jnp.max(jnp.abs(out - ref)))

    out2 = jax.block_until_ready(whitebox_ode_4th_order_forward(t, z, x))
    assert jnp.allclose(out2, ref, rtol=RTOL, atol=ATOL), float(
        jnp.max(jnp.abs(out2 - ref)))

    # ---- planar path (preferred): layout converted ONCE, then zero glue ------
    n = 16 * 256
    zp = interleaved_to_planar(z.reshape(n, 4))         # (4, 32, 128)
    xp = interleaved_to_planar(x.reshape(n, 2))         # (2, 32, 128)

    dp = jax.block_until_ready(whitebox_ode_rhs_planar(xp, zp, tile_r=16))
    assert dp.shape == (4, 32, 128), dp.shape
    d_check = planar_to_interleaved(dp, n).reshape(*batch, 4)
    assert jnp.allclose(d_check, ref, rtol=RTOL, atol=ATOL), float(
        jnp.max(jnp.abs(d_check - ref)))

    # A fully-planar RK4 integrator: every RHS call is the Pallas kernel with
    # no per-call HBM transposes (the pattern recommended for real solves).
    @jax.jit
    def rk4_step(xp_, zp_, dt):
        k1 = whitebox_ode_rhs_planar(xp_, zp_)
        k2 = whitebox_ode_rhs_planar(xp_, zp_ + 0.5 * dt * k1)
        k3 = whitebox_ode_rhs_planar(xp_, zp_ + 0.5 * dt * k2)
        k4 = whitebox_ode_rhs_planar(xp_, zp_ + dt * k3)
        return zp_ + (dt / 6.0) * (k1 + 2.0 * k2 + 2.0 * k3 + k4)

    z_state = zp
    for _ in range(2):
        z_state = rk4_step(xp, z_state, jnp.float32(1e-9))
    z_state = jax.block_until_ready(z_state)
    assert z_state.shape == zp.shape
    assert bool(jnp.all(jnp.isfinite(z_state)))

    # ---- tiny-batch fallback path (pure XLA, exact) ---------------------------
    z_s = jax.random.normal(kz, (8, 4), dtype=jnp.float32)
    x_s = jax.random.normal(kx, (8, 2), dtype=jnp.float32)
    out_s = jax.block_until_ready(whitebox_ode_4th_order_forward(t, z_s, x_s))
    ref_s = _reference_forward(t, z_s, x_s)
    assert out_s.shape == (8, 4)
    assert jnp.allclose(out_s, ref_s, rtol=1e-5, atol=1e-4)

    print("KERNEL_OK")
</pallas_src>

<mosaic_0001>
module attributes {stable_mosaic.version = 11 : i64} {
  func.func @_ode_kernel(%arg0: i32, %arg1: memref<2x8x128xf32, #tpu.memory_space<vmem>>, %arg2: memref<4x8x128xf32, #tpu.memory_space<vmem>>, %arg3: memref<4x8x128xf32, #tpu.memory_space<vmem>>) attributes {dimension_semantics = [#tpu.dimension_semantics<parallel>], iteration_bounds = array<i64: 4>, scalar_prefetch = 0 : i64, scratch_operands = 0 : i64, tpu.core_type = #tpu.core_type<tc>, window_params = [{transform_indices = @transform_0, window_bounds = array<i64: 2, 8, 128>}, {transform_indices = @transform_1, window_bounds = array<i64: 4, 8, 128>}, {transform_indices = @transform_2, window_bounds = array<i64: 4, 8, 128>}]} {
    %c0 = arith.constant 0 : index
    %c0_0 = arith.constant 0 : index
    %c0_1 = arith.constant 0 : index
    %0 = vector.load %arg1[%c0, %c0_0, %c0_1] : memref<2x8x128xf32, #tpu.memory_space<vmem>>, vector<1x8x128xf32>
    %1 = vector.shape_cast %0 : vector<1x8x128xf32> to vector<8x128xf32>
    %c1 = arith.constant 1 : index
    %c0_2 = arith.constant 0 : index
    %c0_3 = arith.constant 0 : index
    %2 = vector.load %arg1[%c1, %c0_2, %c0_3] : memref<2x8x128xf32, #tpu.memory_space<vmem>>, vector<1x8x128xf32>
    %3 = vector.shape_cast %2 : vector<1x8x128xf32> to vector<8x128xf32>
    %c0_4 = arith.constant 0 : index
    %c0_5 = arith.constant 0 : index
    %c0_6 = arith.constant 0 : index
    %4 = vector.load %arg2[%c0_4, %c0_5, %c0_6] : memref<4x8x128xf32, #tpu.memory_space<vmem>>, vector<1x8x128xf32>
    %5 = vector.shape_cast %4 : vector<1x8x128xf32> to vector<8x128xf32>
    %c1_7 = arith.constant 1 : index
    %c0_8 = arith.constant 0 : index
    %c0_9 = arith.constant 0 : index
    %6 = vector.load %arg2[%c1_7, %c0_8, %c0_9] : memref<4x8x128xf32, #tpu.memory_space<vmem>>, vector<1x8x128xf32>
    %7 = vector.shape_cast %6 : vector<1x8x128xf32> to vector<8x128xf32>
    %c2 = arith.constant 2 : index
    %c0_10 = arith.constant 0 : index
    %c0_11 = arith.constant 0 : index
    %8 = vector.load %arg2[%c2, %c0_10, %c0_11] : memref<4x8x128xf32, #tpu.memory_space<vmem>>, vector<1x8x128xf32>
    %9 = vector.shape_cast %8 : vector<1x8x128xf32> to vector<8x128xf32>
    %c3 = arith.constant 3 : index
    %c0_12 = arith.constant 0 : index
    %c0_13 = arith.constant 0 : index
    %10 = vector.load %arg2[%c3, %c0_12, %c0_13] : memref<4x8x128xf32, #tpu.memory_space<vmem>>, vector<1x8x128xf32>
    %11 = vector.shape_cast %10 : vector<1x8x128xf32> to vector<8x128xf32>
    %12 = math.absf %5 : vector<8x128xf32>
    %cst = arith.constant 1.000000e-01 : f32
    %13 = vector.broadcast %cst : f32 to vector<8x128xf32>
    %14 = arith.cmpf olt, %12, %13 : vector<8x128xf32>
    %cst_14 = arith.constant 1.000000e-01 : f32
    %15 = vector.broadcast %cst_14 : f32 to vector<8x128xf32>
    %16 = arith.mulf %15, %12 : vector<8x128xf32>
    %17 = math.exp %16 : vector<8x128xf32>
    %cst_15 = arith.constant 1.000000e+04 : f32
    %18 = vector.broadcast %cst_15 : f32 to vector<8x128xf32>
    %19 = arith.mulf %18, %17 : vector<8x128xf32>
    %cst_16 = arith.constant 1.000000e+04 : f32
    %20 = vector.broadcast %cst_16 : f32 to vector<8x128xf32>
    %21 = arith.select %14, %20, %19 : vector<8x128xi1>, vector<8x128xf32>
    %22 = math.absf %7 : vector<8x128xf32>
    %cst_17 = arith.constant 1.000000e-01 : f32
    %23 = vector.broadcast %cst_17 : f32 to vector<8x128xf32>
    %24 = arith.cmpf olt, %22, %23 : vector<8x128xf32>
    %cst_18 = arith.constant 3.000000e+00 : f32
    %25 = vector.broadcast %cst_18 : f32 to vector<8x128xf32>
    %26 = arith.mulf %25, %7 : vector<8x128xf32>
    %27 = math.tanh %26 : vector<8x128xf32>
    %cst_19 = arith.constant 1.000000e+00 : f32
    %28 = vector.broadcast %cst_19 : f32 to vector<8x128xf32>
    %29 = arith.select %24, %28, %27 : vector<8x128xi1>, vector<8x128xf32>
    %cst_20 = arith.constant 1.000000e+06 : f32
    %30 = vector.broadcast %cst_20 : f32 to vector<8x128xf32>
    %31 = arith.mulf %30, %26 : vector<8x128xf32>
    %32 = tpu.reciprocal %29 {approx = true} : vector<8x128xf32> -> vector<8x128xf32>
    %33 = arith.mulf %31, %32 : vector<8x128xf32>
    %cst_21 = arith.constant 1.000000e+06 : f32
    %34 = vector.broadcast %cst_21 : f32 to vector<8x128xf32>
    %35 = arith.select %24, %34, %33 : vector<8x128xi1>, vector<8x128xf32>
    %36 = arith.subf %11, %3 : vector<8x128xf32>
    %37 = arith.mulf %36, %21 : vector<8x128xf32>
    %c0_22 = arith.constant 0 : index
    %c0_23 = arith.constant 0 : index
    %c0_24 = arith.constant 0 : index
    %38 = vector.load %arg3[%c0_22, %c0_23, %c0_24] : memref<4x8x128xf32, #tpu.memory_space<vmem>>, vector<1x8x128xf32>
    %39 = vector.shape_cast %38 : vector<1x8x128xf32> to vector<8x128xf32>
    %40 = vector.shape_cast %37 : vector<8x128xf32> to vector<1x8x128xf32>
    tpu.vector_store %arg3[%c0_22, %c0_23, %c0_24], %40 {strides = array<i32>} : memref<4x8x128xf32, #tpu.memory_space<vmem>>, vector<1x8x128xf32>,
    %cst_25 = arith.constant 5.000000e-02 : f32
    %41 = vector.broadcast %cst_25 : f32 to vector<8x128xf32>
    %42 = arith.mulf %41, %7 : vector<8x128xf32>
    %43 = arith.subf %1, %42 : vector<8x128xf32>
    %44 = arith.subf %43, %9 : vector<8x128xf32>
    %45 = arith.mulf %44, %35 : vector<8x128xf32>
    %c1_26 = arith.constant 1 : index
    %c0_27 = arith.constant 0 : index
    %c0_28 = arith.constant 0 : index
    %46 = vector.load %arg3[%c1_26, %c0_27, %c0_28] : memref<4x8x128xf32, #tpu.memory_space<vmem>>, vector<1x8x128xf32>
    %47 = vector.shape_cast %46 : vector<1x8x128xf32> to vector<8x128xf32>
    %48 = vector.shape_cast %45 : vector<8x128xf32> to vector<1x8x128xf32>
    tpu.vector_store %arg3[%c1_26, %c0_27, %c0_28], %48 {strides = array<i32>} : memref<4x8x128xf32, #tpu.memory_space<vmem>>, vector<1x8x128xf32>,
    %49 = arith.subf %7, %11 : vector<8x128xf32>
    %cst_29 = arith.constant 2.000000e+03 : f32
    %50 = vector.broadcast %cst_29 : f32 to vector<8x128xf32>
    %51 = arith.mulf %49, %50 : vector<8x128xf32>
    %c2_30 = arith.constant 2 : index
    %c0_31 = arith.constant 0 : index
    %c0_32 = arith.constant 0 : index
    %52 = vector.load %arg3[%c2_30, %c0_31, %c0_32] : memref<4x8x128xf32, #tpu.memory_space<vmem>>, vector<1x8x128xf32>
    %53 = vector.shape_cast %52 : vector<1x8x128xf32> to vector<8x128xf32>
    %54 = vector.shape_cast %51 : vector<8x128xf32> to vector<1x8x128xf32>
    tpu.vector_store %arg3[%c2_30, %c0_31, %c0_32], %54 {strides = array<i32>} : memref<4x8x128xf32, #tpu.memory_space<vmem>>, vector<1x8x128xf32>,
    %cst_33 = arith.constant 9.99999974E-6 : f32
    %55 = vector.broadcast %cst_33 : f32 to vector<8x128xf32>
    %56 = arith.mulf %55, %11 : vector<8x128xf32>
    %57 = arith.subf %9, %56 : vector<8x128xf32>
    %58 = arith.subf %57, %5 : vector<8x128xf32>
    %cst_34 = arith.constant 1.000000e+07 : f32
    %59 = vector.broadcast %cst_34 : f32 to vector<8x128xf32>
    %60 = arith.mulf %58, %59 : vector<8x128xf32>
    %c3_35 = arith.constant 3 : index
    %c0_36 = arith.constant 0 : index
    %c0_37 = arith.constant 0 : index
    %61 = vector.load %arg3[%c3_35, %c0_36, %c0_37] : memref<4x8x128xf32, #tpu.memory_space<vmem>>, vector<1x8x128xf32>
    %62 = vector.shape_cast %61 : vector<1x8x128xf32> to vector<8x128xf32>
    %63 = vector.shape_cast %60 : vector<8x128xf32> to vector<1x8x128xf32>
    tpu.vector_store %arg3[%c3_35, %c0_36, %c0_37], %63 {strides = array<i32>} : memref<4x8x128xf32, #tpu.memory_space<vmem>>, vector<1x8x128xf32>,
    return
  }
  func.func @transform_0(%arg0: i32) -> (i32, i32, i32) {
    %c0_i32 = arith.constant 0 : i32
    %c0_i32_0 = arith.constant 0 : i32
    %c0_i32_1 = arith.constant 0 : i32
    return %c0_i32, %arg0, %c0_i32_0 : i32, i32, i32
  }
  func.func @transform_1(%arg0: i32) -> (i32, i32, i32) {
    %c0_i32 = arith.constant 0 : i32
    %c0_i32_0 = arith.constant 0 : i32
    %c0_i32_1 = arith.constant 0 : i32
    return %c0_i32, %arg0, %c0_i32_0 : i32, i32, i32
  }
  func.func @transform_2(%arg0: i32) -> (i32, i32, i32) {
    %c0_i32 = arith.constant 0 : i32
    %c0_i32_0 = arith.constant 0 : i32
    %c0_i32_1 = arith.constant 0 : i32
    return %c0_i32, %arg0, %c0_i32_0 : i32, i32, i32
  }
}

</mosaic_0001>

<llo_original>
// kernel: whitebox_ode_4th_order_forward.1
$region0: #{whitebox_ode_4th_order_forward.1}
  #allocation0 [shape = 'u32[]', space=smem, size = 0x4, offset = 0x4, fixed_abs, tag = 'smem constant byte address 0x4 - core index']
  #allocation1 [shape = 'u32[144,128]{1,0:T(1,128)}', space=vmem, size = 0x12000, scoped, tag = 'internal scratch']
  %s0 = inlined_call_operand.vmem [shape: f32[2,32,128], index: 0, kind: input, shape index: {}]
  %s1 = inlined_call_operand.vmem [shape: f32[4,32,128], index: 1, kind: input, shape index: {}]
  %s2 = inlined_call_operand.vmem [shape: f32[4,32,128], index: 2, kind: output, shape index: {}]
  %s3 = sld [smem:[#allocation0]]
  $region151: #{whitebox_ode_4th_order_forward.1} parent=0
    _
  %s5 = ssub.s32 1, %s3
  %s6 = scalar_select 0, %s5, %s3
  $region1: #{whitebox_ode_4th_order_forward.1} parent=0
    #allocation2 [shape = 'u8[16384]{0}', space=vmem, size = 0x4000, scoped, tag = 'input window, operand 0']
    #allocation3 [shape = 'u8[32768]{0}', space=vmem, size = 0x8000, scoped, tag = 'input window, operand 1']
    #allocation4 [shape = 'u8[32768]{0}', space=vmem, size = 0x8000, scoped, tag = 'output window, operand 0']
    loop: start=0, step=1, limit=6
    $region2: #{whitebox_ode_4th_order_forward.1} parent=1 // loop_pre_header
      _
    $region3: #{whitebox_ode_4th_order_forward.1} parent=1 // loop_header
      %s8 = sphi 0, %s12
      %p9 = scmp.ge.s32.totalorder %s8, 6
      %s18 = sphi 0, %s20
      %s21 = sphi 0, %s18
      %s22 = sphi 0, %s21
      %s38 = sphi 0, %s22
      %s44 = sphi 0, %s46
      %s47 = sphi 0, %s44
      %s48 = sphi 0, %s47
      %s64 = sphi 0, %s48
      %s70 = sphi 0, %s72
      %s73 = sphi 0, %s70
      %s74 = sphi 0, %s73
      %s90 = sphi 0, %s74
    $region4: #{whitebox_ode_4th_order_forward.1} parent=1 // loop_header_branch
      %11 = sbr.rel (%p9) target = $region8
    $region5: #{whitebox_ode_4th_order_forward.1} parent=1 // loop_body
      %s13 = ssub.s32 %s8, 1
      %s14 = ssub.s32 %s8, 2
      %s15 = sadd.s32 %s8, 1
      %s16 = ssub.s32 %s8, %s15
      %p17 = scmp.eq.s32.totalorder %s16, 0
      %s19 = sadd.s32 %s18, 1
      %s20 = scalar_select %p17, %s18, %s19
      %p23 = pneg %p17
      %p24 = scmp.eq.s32.totalorder %s8, 3
      %p25 = por %p23, %p24
      %p26 = scmp.ne.s32.totalorder %s18, %s21
      %p27 = scmp.eq.s32.totalorder %s8, 0
      %p28 = por %p26, %p27
      %p29 = scmp.ne.s32.totalorder %s18, %s21
      %p30 = scmp.eq.s32.totalorder %s13, 3
      %p31 = por %p29, %p30
      %p32 = scmp.ne.s32.totalorder %s21, %s22
      %p33 = scmp.eq.s32.totalorder %s13, 0
      %p34 = por %p32, %p33
      %p35 = scmp.ne.s32.totalorder %s21, %s22
      %p36 = scmp.eq.s32.totalorder %s14, 3
      %p37 = por %p35, %p36
      %p39 = scmp.ne.s32.totalorder %s22, %s38
      %p40 = scmp.eq.s32.totalorder %s14, 0
      %p41 = por %p39, %p40
      %s42 = ssub.s32 %s8, %s15
      %p43 = scmp.eq.s32.totalorder %s42, 0
      %s45 = sadd.s32 %s44, 1
      %s46 = scalar_select %p43, %s44, %s45
      %p49 = pneg %p43
      %p50 = scmp.eq.s32.totalorder %s8, 3
      %p51 = por %p49, %p50
      %p52 = scmp.ne.s32.totalorder %s44, %s47
      %p53 = scmp.eq.s32.totalorder %s8, 0
      %p54 = por %p52, %p53
      %p55 = scmp.ne.s32.totalorder %s44, %s47
      %p56 = scmp.eq.s32.totalorder %s13, 3
      %p57 = por %p55, %p56
      %p58 = scmp.ne.s32.totalorder %s47, %s48
      %p59 = scmp.eq.s32.totalorder %s13, 0
      %p60 = por %p58, %p59
      %p61 = scmp.ne.s32.totalorder %s47, %s48
      %p62 = scmp.eq.s32.totalorder %s14, 3
      %p63 = por %p61, %p62
      %p65 = scmp.ne.s32.totalorder %s48, %s64
      %p66 = scmp.eq.s32.totalorder %s14, 0
      %p67 = por %p65, %p66
      %s68 = ssub.s32 %s8, %s15
      %p69 = scmp.eq.s32.totalorder %s68, 0
      %s71 = sadd.s32 %s70, 1
      %s72 = scalar_select %p69, %s70, %s71
      %p75 = pneg %p69
      %p76 = scmp.eq.s32.totalorder %s8, 3
      %p77 = por %p75, %p76
      %p78 = scmp.ne.s32.totalorder %s70, %s73
      %p79 = scmp.eq.s32.totalorder %s8, 0
      %p80 = por %p78, %p79
      %p81 = scmp.ne.s32.totalorder %s70, %s73
      %p82 = scmp.eq.s32.totalorder %s13, 3
      %p83 = por %p81, %p82
      %p84 = scmp.ne.s32.totalorder %s73, %s74
      %p85 = scmp.eq.s32.totalorder %s13, 0
      %p86 = por %p84, %p85
      %p87 = scmp.ne.s32.totalorder %s73, %s74
      %p88 = scmp.eq.s32.totalorder %s14, 3
      %p89 = por %p87, %p88
      %p91 = scmp.ne.s32.totalorder %s74, %s90
      %p92 = scmp.eq.s32.totalorder %s14, 0
      %p93 = por %p91, %p92
      %p94 = scmp.le.s32.totalorder 1, %s8
      %p95 = scmp.lt.s32.totalorder %s8, 5
      %p96 = pnand %p94, %p95
      %p97 = pneg %p96
      // Predicated region
      $region9: #{whitebox_ode_4th_order_forward.1} parent=5 // pred_check
        _
      $region10: #{whitebox_ode_4th_order_forward.1} parent=5 // pred_check_branch
        %99 = sbr.rel (%p96) target = $region12
      $region11: #{whitebox_ode_4th_order_forward.1} parent=5 // pred_region
        %s100 = ssub.s32 %s8, 1
      $region12: #{whitebox_ode_4th_order_forward.1} parent=5 // pred_fallthru
        _
      %p101 = scmp.lt.s32.totalorder %s8, 4
      // Predicated region
      $region13: #{whitebox_ode_4th_order_forward.1} parent=5 // pred_check
        %p102 = pneg %p101
      $region14: #{whitebox_ode_4th_order_forward.1} parent=5 // pred_check_branch
        %104 = sbr.rel (%p102) target = $region16
      $region15: #{whitebox_ode_4th_order_forward.1} parent=5 // pred_region
        // Predicated region
        $region17: #{whitebox_ode_4th_order_forward.1} parent=15 // pred_check
          %p105 = pneg %p28
        $region18: #{whitebox_ode_4th_order_forward.1} parent=15 // pred_check_branch
          %107 = sbr.rel (%p105) target = $region20
        $region19: #{whitebox_ode_4th_order_forward.1} parent=15 // pred_region
          %s108 = sand.u32 %s18, 1
          %s109 = sand.u32 %s18, 1
          %s110 = smul.addr %s109, 16
          %s111 = scalar_lea.vmem [#allocation2], %s110
          %s112 = smul.addr %s8, 8
          %s113 = scalar_lea.vmem %s0, %s112
          // Predicated region
          $region21: #{whitebox_ode_4th_order_forward.1} parent=19 // pred_check
            _
          $region22: #{whitebox_ode_4th_order_forward.1} parent=19 // pred_check_branch
            %115 = sbr.rel (0) target = $region24
          $region23: #{whitebox_ode_4th_order_forward.1} parent=19 // pred_region
            // Predicated region
            $region25: #{whitebox_ode_4th_order_forward.1} parent=23 // pred_check
              _
            $region26: #{whitebox_ode_4th_order_forward.1} parent=23 // pred_check_branch
              %117 = sbr.rel (0) target = $region28
            $region27: #{whitebox_ode_4th_order_forward.1} parent=23 // pred_region
              // Predicated region
              $region40: #{whitebox_ode_4th_order_forward.1} parent=27 // pred_check
                _
              $region41: #{whitebox_ode_4th_order_forward.1} parent=27 // pred_check_branch
                %135 = sbr.rel (0) target = $region43
              $region42: #{whitebox_ode_4th_order_forward.1} parent=27 // pred_region
                loop: start=0, step=1, limit=1
                $region44: #{whitebox_ode_4th_order_forward.1} parent=42 // loop_pre_header
                  _
                $region45: #{whitebox_ode_4th_order_forward.1} parent=42 // loop_header
                  %s137 = sphi 0, %s141
                  %p138 = scmp.ge.s32.totalorder %s137, 1
                  %s142 = sphi %s113, %s113
                  %s143 = sphi %s111, %s111
                $region46: #{whitebox_ode_4th_order_forward.1} parent=42 // loop_header_branch
                  %140 = sbr.rel (%p138) target = $region50
                $region47: #{whitebox_ode_4th_order_forward.1} parent=42 // loop_body
                  %v144 = vld [vmem:[%s142] sm:$0xff]
                  %145 = vst [vmem:[%s143] sm:$0xff] %v144
                  %v146 = vld [vmem:[%s142 + $0x20] sm:$0xff]
                  %147 = vst [vmem:[%s143 + $0x8] sm:$0xff] %v146
                $region48: #{whitebox_ode_4th_order_forward.1} parent=42 // loop_footer
                  %s141 = sadd.s32 1, %s137
                $region49: #{whitebox_ode_4th_order_forward.1} parent=42 // loop_footer_branch
                  %136 = sbr.rel target = $region45
                $region50: #{whitebox_ode_4th_order_forward.1} parent=42 // loop_exit
                  _
              $region43: #{whitebox_ode_4th_order_forward.1} parent=27 // pred_fallthru
                _
              // Predicated region
              $region51: #{whitebox_ode_4th_order_forward.1} parent=27 // pred_check
                _
              $region52: #{whitebox_ode_4th_order_forward.1} parent=27 // pred_check_branch
                %149 = sbr.rel target = $region54
              $region53: #{whitebox_ode_4th_order_forward.1} parent=27 // pred_region
                _
              $region54: #{whitebox_ode_4th_order_forward.1} parent=27 // pred_fallthru
                _
            $region28: #{whitebox_ode_4th_order_forward.1} parent=23 // pred_fallthru
              _
            // Predicated region
            $region29: #{whitebox_ode_4th_order_forward.1} parent=23 // pred_check
              _
            $region30: #{whitebox_ode_4th_order_forward.1} parent=23 // pred_check_branch
              %119 = sbr.rel target = $region32
            $region31: #{whitebox_ode_4th_order_forward.1} parent=23 // pred_region
              %s121 = ssub.s32 256, 1
              loop: start=0, step=1, limit=1
              $region33: #{whitebox_ode_4th_order_forward.1} parent=31 // loop_pre_header
                _
              $region34: #{whitebox_ode_4th_order_forward.1} parent=31 // loop_header
                %s123 = sphi 0, %s127
                %p124 = scmp.ge.s32.totalorder %s123, 1
                %s128 = sphi %s113, %s113
                %s129 = sphi %s111, %s111
              $region35: #{whitebox_ode_4th_order_forward.1} parent=31 // loop_header_branch
                %126 = sbr.rel (%p124) target = $region39
              $region36: #{whitebox_ode_4th_order_forward.1} parent=31 // loop_body
                %v130 = vld [vmem:[%s128] sm:%s121]
                %131 = vst [vmem:[%s129] sm:%s121] %v130
                %v132 = vld [vmem:[%s128 + $0x20] sm:%s121]
                %133 = vst [vmem:[%s129 + $0x8] sm:%s121] %v132
              $region37: #{whitebox_ode_4th_order_forward.1} parent=31 // loop_footer
                %s127 = sadd.s32 1, %s123
              $region38: #{whitebox_ode_4th_order_forward.1} parent=31 // loop_footer_branch
                %122 = sbr.rel target = $region34
              $region39: #{whitebox_ode_4th_order_forward.1} parent=31 // loop_exit
                _
            $region32: #{whitebox_ode_4th_order_forward.1} parent=23 // pred_fallthru
              _
          $region24: #{whitebox_ode_4th_order_forward.1} parent=19 // pred_fallthru
            _
          %150 = vnop
        $region20: #{whitebox_ode_4th_order_forward.1} parent=15 // pred_fallthru
          _
        // Predicated region
        $region55: #{whitebox_ode_4th_order_forward.1} parent=15 // pred_check
          %p151 = pneg %p54
        $region56: #{whitebox_ode_4th_order_forward.1} parent=15 // pred_check_branch
          %153 = sbr.rel (%p151) target = $region58
        $region57: #{whitebox_ode_4th_order_forward.1} parent=15 // pred_region
          %s154 = sand.u32 %s44, 1
          %s155 = sand.u32 %s44, 1
          %s156 = smul.addr %s155, 32
          %s157 = scalar_lea.vmem [#allocation3], %s156
          %s158 = smul.addr %s8, 8
          %s159 = scalar_lea.vmem %s1, %s158
          // Predicated region
          $region59: #{whitebox_ode_4th_order_forward.1} parent=57 // pred_check
            _
          $region60: #{whitebox_ode_4th_order_forward.1} parent=57 // pred_check_branch
            %161 = sbr.rel (0) target = $region62
          $region61: #{whitebox_ode_4th_order_forward.1} parent=57 // pred_region
            // Predicated region
            $region63: #{whitebox_ode_4th_order_forward.1} parent=61 // pred_check
              _
            $region64: #{whitebox_ode_4th_order_forward.1} parent=61 // pred_check_branch
              %163 = sbr.rel (0) target = $region66
            $region65: #{whitebox_ode_4th_order_forward.1} parent=61 // pred_region
              // Predicated region
              $region78: #{whitebox_ode_4th_order_forward.1} parent=65 // pred_check
                _
              $region79: #{whitebox_ode_4th_order_forward.1} parent=65 // pred_check_branch
                %185 = sbr.rel (0) target = $region81
              $region80: #{whitebox_ode_4th_order_forward.1} parent=65 // pred_region
                loop: start=0, step=1, limit=1
                $region82: #{whitebox_ode_4th_order_forward.1} parent=80 // loop_pre_header
                  _
                $region83: #{whitebox_ode_4th_order_forward.1} parent=80 // loop_header
                  %s187 = sphi 0, %s191
                  %p188 = scmp.ge.s32.totalorder %s187, 1
                  %s192 = sphi %s159, %s159
                  %s193 = sphi %s157, %s157
                $region84: #{whitebox_ode_4th_order_forward.1} parent=80 // loop_header_branch
                  %190 = sbr.rel (%p188) target = $region88
                $region85: #{whitebox_ode_4th_order_forward.1} parent=80 // loop_body
                  %v194 = vld [vmem:[%s192] sm:$0xff]
                  %195 = vst [vmem:[%s193] sm:$0xff] %v194
                  %v196 = vld [vmem:[%s192 + $0x20] sm:$0xff]
                  %197 = vst [vmem:[%s193 + $0x8] sm:$0xff] %v196
                  %v198 = vld [vmem:[%s192 + $0x40] sm:$0xff]
                  %199 = vst [vmem:[%s193 + $0x10] sm:$0xff] %v198
                  %v200 = vld [vmem:[%s192 + $0x60] sm:$0xff]
                  %201 = vst [vmem:[%s193 + $0x18] sm:$0xff] %v200
                $region86: #{whitebox_ode_4th_order_forward.1} parent=80 // loop_footer
                  %s191 = sadd.s32 1, %s187
                $region87: #{whitebox_ode_4th_order_forward.1} parent=80 // loop_footer_branch
                  %186 = sbr.rel target = $region83
                $region88: #{whitebox_ode_4th_order_forward.1} parent=80 // loop_exit
                  _
              $region81: #{whitebox_ode_4th_order_forward.1} parent=65 // pred_fallthru
                _
              // Predicated region
              $region89: #{whitebox_ode_4th_order_forward.1} parent=65 // pred_check
                _
              $region90: #{whitebox_ode_4th_order_forward.1} parent=65 // pred_check_branch
                %203 = sbr.rel target = $region92
              $region91: #{whitebox_ode_4th_order_forward.1} parent=65 // pred_region
                _
              $region92: #{whitebox_ode_4th_order_forward.1} parent=65 // pred_fallthru
                _
            $region66: #{whitebox_ode_4th_order_forward.1} parent=61 // pred_fallthru
              _
            // Predicated region
            $region67: #{whitebox_ode_4th_order_forward.1} parent=61 // pred_check
              _
            $region68: #{whitebox_ode_4th_order_forward.1} parent=61 // pred_check_branch
              %165 = sbr.rel target = $region70
            $region69: #{whitebox_ode_4th_order_forward.1} parent=61 // pred_region
              %s167 = ssub.s32 256, 1
              loop: start=0, step=1, limit=1
              $region71: #{whitebox_ode_4th_order_forward.1} parent=69 // loop_pre_header
                _
              $region72: #{whitebox_ode_4th_order_forward.1} parent=69 // loop_header
                %s169 = sphi 0, %s173
                %p170 = scmp.ge.s32.totalorder %s169, 1
                %s174 = sphi %s159, %s159
                %s175 = sphi %s157, %s157
              $region73: #{whitebox_ode_4th_order_forward.1} parent=69 // loop_header_branch
                %172 = sbr.rel (%p170) target = $region77
              $region74: #{whitebox_ode_4th_order_forward.1} parent=69 // loop_body
                %v176 = vld [vmem:[%s174] sm:%s167]
                %177 = vst [vmem:[%s175] sm:%s167] %v176
                %v178 = vld [vmem:[%s174 + $0x20] sm:%s167]
                %179 = vst [vmem:[%s175 + $0x8] sm:%s167] %v178
                %v180 = vld [vmem:[%s174 + $0x40] sm:%s167]
                %181 = vst [vmem:[%s175 + $0x10] sm:%s167] %v180
                %v182 = vld [vmem:[%s174 + $0x60] sm:%s167]
                %183 = vst [vmem:[%s175 + $0x18] sm:%s167] %v182
              $region75: #{whitebox_ode_4th_order_forward.1} parent=69 // loop_footer
                %s173 = sadd.s32 1, %s169
              $region76: #{whitebox_ode_4th_order_forward.1} parent=69 // loop_footer_branch
                %168 = sbr.rel target = $region72
              $region77: #{whitebox_ode_4th_order_forward.1} parent=69 // loop_exit
                _
            $region70: #{whitebox_ode_4th_order_forward.1} parent=61 // pred_fallthru
              _
          $region62: #{whitebox_ode_4th_order_forward.1} parent=57 // pred_fallthru
            _
          %204 = vnop
        $region58: #{whitebox_ode_4th_order_forward.1} parent=15 // pred_fallthru
          _
      $region16: #{whitebox_ode_4th_order_forward.1} parent=5 // pred_fallthru
        _
      %p205 = scmp.le.s32.totalorder 1, %s8
      %p206 = scmp.lt.s32.totalorder %s8, 5
      %p207 = pnand %p205, %p206
      %p208 = pneg %p207
      // Predicated region
      $region93: #{whitebox_ode_4th_order_forward.1} parent=5 // pred_check
        _
      $region94: #{whitebox_ode_4th_order_forward.1} parent=5 // pred_check_branch
        %210 = sbr.rel (%p207) target = $region96
      $region95: #{whitebox_ode_4th_order_forward.1} parent=5 // pred_region
        %s211 = ssub.s32 %s8, 1
        %s212 = sand.u32 %s21, 1
        %s213 = sand.u32 %s21, 1
        %s214 = smul.addr %s213, 16
        %s215 = scalar_lea.vmem [#allocation2], %s214
        // Predicated region
        $region97: #{whitebox_ode_4th_order_forward.1} parent=95 // pred_check
          %p216 = pneg %p34
        $region98: #{whitebox_ode_4th_order_forward.1} parent=95 // pred_check_branch
          %218 = sbr.rel (%p216) target = $region100
        $region99: #{whitebox_ode_4th_order_forward.1} parent=95 // pred_region
          _
        $region100: #{whitebox_ode_4th_order_forward.1} parent=95 // pred_fallthru
          _
        %s219 = sand.u32 %s47, 1
        %s220 = sand.u32 %s47, 1
        %s221 = smul.addr %s220, 32
        %s222 = scalar_lea.vmem [#allocation3], %s221
        // Predicated region
        $region101: #{whitebox_ode_4th_order_forward.1} parent=95 // pred_check
          %p223 = pneg %p60
        $region102: #{whitebox_ode_4th_order_forward.1} parent=95 // pred_check_branch
          %225 = sbr.rel (%p223) target = $region104
        $region103: #{whitebox_ode_4th_order_forward.1} parent=95 // pred_region
          _
        $region104: #{whitebox_ode_4th_order_forward.1} parent=95 // pred_fallthru
          _
        %s226 = sand.u32 %s21, 1
        %s227 = sand.u32 %s21, 1
        %s228 = smul.addr %s227, 16
        %s229 = scalar_lea.vmem [#allocation2], %s228
        %p230 = pneg %p34
        %p231 = pneg %p31
        %s232 = sand.u32 %s47, 1
        %s233 = sand.u32 %s47, 1
        %s234 = smul.addr %s233, 32
        %s235 = scalar_lea.vmem [#allocation3], %s234
        %p236 = pneg %p60
        %p237 = pneg %p57
        %p238 = pneg %p86
        %p239 = pneg %p83
        %s240 = sand.u32 %s73, 1
        %s241 = sand.u32 %s73, 1
        %s242 = smul.addr %s241, 32
        %s243 = scalar_lea.vmem [#allocation4], %s242
        %v244 = vld [vmem:[%s215] sm:$0xff]
        %s245 = scalar_lea.vmem %s215, 8 [#allocation2]
        %v246 = vld [vmem:[%s245] sm:$0xff]
        %v247 = vld [vmem:[%s222] sm:$0xff]
        %s248 = scalar_lea.vmem %s222, 8 [#allocation3]
        %v249 = vld [vmem:[%s248] sm:$0xff]
        %s250 = scalar_lea.vmem %s222, 16 [#allocation3]
        %v251 = vld [vmem:[%s250] sm:$0xff]
        %s252 = scalar_lea.vmem %s222, 24 [#allocation3]
        %v253 = vld [vmem:[%s252] sm:$0xff]
        %v254 = vand.u32 2147483647, %v247
        %vm255 = vcmp.lt.f32.partialorder %v254, 0.1
        %v256 = vmul.f32 %v254, 0.1
        %v257 = vmul.f32 %v256, 1.442695
        %v258 = vpow.pop %v257
        %v259 = vmul.f32 %v258, 10000.0
        %v260 = vsel %vm255, 10000.0, %v259
        %v261 = vand.u32 2147483647, %v249
        %vm262 = vcmp.lt.f32.partialorder %v261, 0.1
        %v263 = vmul.f32 %v249, 3.0
        %v264 = vtanh.pop %v263
        %v265 = vsel %vm262, 1.0, %v264
        %v266 = vmul.f32 %v263, 1000000.0
        %v267 = vrcp.pop %v265
        %v268 = vmul.f32 %v266, %v267
        %v269 = vsel %vm262, 1000000.0, %v268
        %v270 = vsub.f32 %v253, %v246
        %v271 = vmul.f32 %v270, %v260
        %272 = vst [vmem:[%s243] sm:$0xff] %v271
        %v273 = vmul.f32 %v249, 0.05
        %v274 = vsub.f32 %v244, %v273
        %v275 = vsub.f32 %v274, %v251
        %v276 = vmul.f32 %v275, %v269
        %s277 = scalar_lea.vmem %s243, 8 [#allocation4]
        %278 = vst [vmem:[%s277] sm:$0xff] %v276
        %v279 = vsub.f32 %v249, %v253
        %v280 = vmul.f32 %v279, 2000.0
        %s281 = scalar_lea.vmem %s243, 16 [#allocation4]
        %282 = vst [vmem:[%s281] sm:$0xff] %v280
        %v283 = vmul.f32 %v253, 1e-05
        %v284 = vsub.f32 %v251, %v283
        %v285 = vsub.f32 %v284, %v247
        %v286 = vmul.f32 %v285, 10000000.0
        %s287 = scalar_lea.vmem %s243, 24 [#allocation4]
        %288 = vst [vmem:[%s287] sm:$0xff] %v286
        %s289 = sand.u32 %s73, 1
        %s290 = sand.u32 %s73, 1
        %s291 = smul.addr %s290, 32
        %s292 = scalar_lea.vmem [#allocation4], %s291
        // Predicated region
        $region105: #{whitebox_ode_4th_order_forward.1} parent=95 // pred_check
          %p293 = pneg %p83
        $region106: #{whitebox_ode_4th_order_forward.1} parent=95 // pred_check_branch
          %295 = sbr.rel (%p293) target = $region108
        $region107: #{whitebox_ode_4th_order_forward.1} parent=95 // pred_region
          %s296 = smul.addr %s13, 8
          %s297 = scalar_lea.vmem %s2, %s296
          // Predicated region
          $region109: #{whitebox_ode_4th_order_forward.1} parent=107 // pred_check
            _
          $region110: #{whitebox_ode_4th_order_forward.1} parent=107 // pred_check_branch
            %299 = sbr.rel (0) target = $region112
          $region111: #{whitebox_ode_4th_order_forward.1} parent=107 // pred_region
            // Predicated region
            $region113: #{whitebox_ode_4th_order_forward.1} parent=111 // pred_check
              _
            $region114: #{whitebox_ode_4th_order_forward.1} parent=111 // pred_check_branch
              %301 = sbr.rel (0) target = $region116
            $region115: #{whitebox_ode_4th_order_forward.1} parent=111 // pred_region
              // Predicated region
              $region128: #{whitebox_ode_4th_order_forward.1} parent=115 // pred_check
                _
              $region129: #{whitebox_ode_4th_order_forward.1} parent=115 // pred_check_branch
                %323 = sbr.rel (0) target = $region131
              $region130: #{whitebox_ode_4th_order_forward.1} parent=115 // pred_region
                loop: start=0, step=1, limit=1
                $region132: #{whitebox_ode_4th_order_forward.1} parent=130 // loop_pre_header
                  _
                $region133: #{whitebox_ode_4th_order_forward.1} parent=130 // loop_header
                  %s325 = sphi 0, %s329
                  %p326 = scmp.ge.s32.totalorder %s325, 1
                  %s330 = sphi %s292, %s292
                  %s331 = sphi %s297, %s297
                $region134: #{whitebox_ode_4th_order_forward.1} parent=130 // loop_header_branch
                  %328 = sbr.rel (%p326) target = $region138
                $region135: #{whitebox_ode_4th_order_forward.1} parent=130 // loop_body
                  %v332 = vld [vmem:[%s330] sm:$0xff]
                  %333 = vst [vmem:[%s331] sm:$0xff] %v332
                  %v334 = vld [vmem:[%s330 + $0x8] sm:$0xff]
                  %335 = vst [vmem:[%s331 + $0x20] sm:$0xff] %v334
                  %v336 = vld [vmem:[%s330 + $0x10] sm:$0xff]
                  %337 = vst [vmem:[%s331 + $0x40] sm:$0xff] %v336
                  %v338 = vld [vmem:[%s330 + $0x18] sm:$0xff]
                  %339 = vst [vmem:[%s331 + $0x60] sm:$0xff] %v338
                $region136: #{whitebox_ode_4th_order_forward.1} parent=130 // loop_footer
                  %s329 = sadd.s32 1, %s325
                $region137: #{whitebox_ode_4th_order_forward.1} parent=130 // loop_footer_branch
                  %324 = sbr.rel target = $region133
                $region138: #{whitebox_ode_4th_order_forward.1} parent=130 // loop_exit
                  _
              $region131: #{whitebox_ode_4th_order_forward.1} parent=115 // pred_fallthru
                _
              // Predicated region
              $region139: #{whitebox_ode_4th_order_forward.1} parent=115 // pred_check
                _
              $region140: #{whitebox_ode_4th_order_forward.1} parent=115 // pred_check_branch
                %341 = sbr.rel target = $region142
              $region141: #{whitebox_ode_4th_order_forward.1} parent=115 // pred_region
                _
              $region142: #{whitebox_ode_4th_order_forward.1} parent=115 // pred_fallthru
                _
            $region116: #{whitebox_ode_4th_order_forward.1} parent=111 // pred_fallthru
              _
            // Predicated region
            $region117: #{whitebox_ode_4th_order_forward.1} parent=111 // pred_check
              _
            $region118: #{whitebox_ode_4th_order_forward.1} parent=111 // pred_check_branch
              %303 = sbr.rel target = $region120
            $region119: #{whitebox_ode_4th_order_forward.1} parent=111 // pred_region
              %s305 = ssub.s32 256, 1
              loop: start=0, step=1, limit=1
              $region121: #{whitebox_ode_4th_order_forward.1} parent=119 // loop_pre_header
                _
              $region122: #{whitebox_ode_4th_order_forward.1} parent=119 // loop_header
                %s307 = sphi 0, %s311
                %p308 = scmp.ge.s32.totalorder %s307, 1
                %s312 = sphi %s292, %s292
                %s313 = sphi %s297, %s297
              $region123: #{whitebox_ode_4th_order_forward.1} parent=119 // loop_header_branch
                %310 = sbr.rel (%p308) target = $region127
              $region124: #{whitebox_ode_4th_order_forward.1} parent=119 // loop_body
                %v314 = vld [vmem:[%s312] sm:%s305]
                %315 = vst [vmem:[%s313] sm:%s305] %v314
                %v316 = vld [vmem:[%s312 + $0x8] sm:%s305]
                %317 = vst [vmem:[%s313 + $0x20] sm:%s305] %v316
                %v318 = vld [vmem:[%s312 + $0x10] sm:%s305]
                %319 = vst [vmem:[%s313 + $0x40] sm:%s305] %v318
                %v320 = vld [vmem:[%s312 + $0x18] sm:%s305]
                %321 = vst [vmem:[%s313 + $0x60] sm:%s305] %v320
              $region125: #{whitebox_ode_4th_order_forward.1} parent=119 // loop_footer
                %s311 = sadd.s32 1, %s307
              $region126: #{whitebox_ode_4th_order_forward.1} parent=119 // loop_footer_branch
                %306 = sbr.rel target = $region122
              $region127: #{whitebox_ode_4th_order_forward.1} parent=119 // loop_exit
                _
            $region120: #{whitebox_ode_4th_order_forward.1} parent=111 // pred_fallthru
              _
          $region112: #{whitebox_ode_4th_order_forward.1} parent=107 // pred_fallthru
            _
          %342 = vnop
        $region108: #{whitebox_ode_4th_order_forward.1} parent=95 // pred_fallthru
          _
      $region96: #{whitebox_ode_4th_order_forward.1} parent=5 // pred_fallthru
        _
      %p343 = scmp.le.s32.totalorder 2, %s8
      // Predicated region
      $region143: #{whitebox_ode_4th_order_forward.1} parent=5 // pred_check
        %p344 = pneg %p343
      $region144: #{whitebox_ode_4th_order_forward.1} parent=5 // pred_check_branch
        %346 = sbr.rel (%p344) target = $region146
      $region145: #{whitebox_ode_4th_order_forward.1} parent=5 // pred_region
        %s347 = ssub.s32 %s8, 2
        // Predicated region
        $region147: #{whitebox_ode_4th_order_forward.1} parent=145 // pred_check
          %p348 = pneg %p89
        $region148: #{whitebox_ode_4th_order_forward.1} parent=145 // pred_check_branch
          %350 = sbr.rel (%p348) target = $region150
        $region149: #{whitebox_ode_4th_order_forward.1} parent=145 // pred_region
          %s351 = sand.u32 %s74, 1
          %s352 = sand.u32 %s74, 1
          %s353 = smul.addr %s352, 32
          %s354 = scalar_lea.vmem [#allocation4], %s353
        $region150: #{whitebox_ode_4th_order_forward.1} parent=145 // pred_fallthru
          _
      $region146: #{whitebox_ode_4th_order_forward.1} parent=5 // pred_fallthru
        _
    $region6: #{whitebox_ode_4th_order_forward.1} parent=1 // loop_footer
      %s12 = sadd.s32 1, %s8
    $region7: #{whitebox_ode_4th_order_forward.1} parent=1 // loop_footer_branch
      %7 = sbr.rel target = $region3
    $region8: #{whitebox_ode_4th_order_forward.1} parent=1 // loop_exit
      _

</llo_original>
